<compile_context>
chip_gen: v5e
topology: v5e:2x2
jax: 0.10.0
libtpu: 0.0.40
codegen_flags: <defaults>
</compile_context>

<pallas_src>
import functools

import jax
import jax.numpy as jnp
from jax.experimental import pallas as pl
from jax.experimental.pallas import tpu as pltpu


def _round_up(x, m):
    return (x + m - 1) // m * m


def _vmem_capacity_bytes():
    """Physical VMEM per core (128 MiB v5e/v6e, 64 MiB v7x); safe fallback."""
    try:
        return int(pltpu.get_tpu_info().vmem_capacity_bytes)
    except Exception:
        return 64 * 1024 * 1024


# ----------------------------------------------------------------------------
# Stage 1: XW = x @ W  (row-tiled, runs once; output kept in compute dtype)
# ----------------------------------------------------------------------------
def _xw_kernel(x_ref, w_ref, xw_ref):
    xw_ref[...] = jnp.dot(
        x_ref[...], w_ref[...], preferred_element_type=jnp.float32
    ).astype(xw_ref.dtype)


# ----------------------------------------------------------------------------
# Stage 2: Z = A @ XW + b  (grid = (row tiles i, reduction tiles k))
# Accumulate directly into the f32 output block; init with bias at k == 0.
# ----------------------------------------------------------------------------
def _a_xw_resident_kernel(a_ref, xw_ref, b_ref, z_ref, *, tk):
    # xw_ref holds ALL of XW in VMEM (fetched from HBM exactly once).
    k = pl.program_id(1)

    @pl.when(k == 0)
    def _init():
        z_ref[...] = jnp.zeros_like(z_ref) + b_ref[...]

    start = pl.multiple_of(k * tk, tk)
    z_ref[...] += jnp.dot(
        a_ref[...], xw_ref[pl.ds(start, tk), :],
        preferred_element_type=jnp.float32,
    )


def _a_xw_tiled_kernel(a_ref, xw_ref, b_ref, z_ref):
    # Fallback: XW streamed as (tk, f_out_p) tiles when it can't stay resident.
    k = pl.program_id(1)

    @pl.when(k == 0)
    def _init():
        z_ref[...] = jnp.zeros_like(z_ref) + b_ref[...]

    z_ref[...] += jnp.dot(
        a_ref[...], xw_ref[...], preferred_element_type=jnp.float32
    )


def spectral_graph_conv(A, x, W, b=None, *, tm=512, tk=2048,
                        compute_dtype=jnp.bfloat16):
    """z = A @ (x @ W) + b computed with tiled, pipelined Pallas TPU kernels."""
    N = A.shape[0]
    F_in = x.shape[1]
    F_out = W.shape[1]

    # Lane-dense output padding; 256-wide when F_out spills past one MXU tile
    # (v6e/v7x MXUs are 256 wide), otherwise 128 is exact.
    f_out_p = _round_up(F_out, 256 if F_out > 128 else 128)

    cdt = jnp.dtype(compute_dtype)
    itemsize = cdt.itemsize

    # ---- Tile selection (clamped to the padded problem) ----
    tm = min(tm, _round_up(N, 16))
    if N >= 32:
        # Keep at least 2 row tiles so the "parallel" axis can use both v7x TCs.
        tm = min(tm, _round_up((N + 1) // 2, 16))
    tk = min(tk, _round_up(N, 128))
    n_m = _round_up(N, tm)   # padded rows of A / rows of Z
    n_k = _round_up(N, tk)   # padded cols of A / rows of XW

    # ---- Per-generation VMEM budget ----
    vmem_cap = _vmem_capacity_bytes()
    vmem_limit = max(32 * 1024 * 1024, int(vmem_cap * 0.75))  # ~96 MiB v5e/v6e, ~48 MiB v7x
    budget = int(vmem_limit * 0.85)                           # headroom for compiler scratch

    # Keep XW fully VMEM-resident (one HBM read) when it fits the budget.
    fixed_bytes = (tm * tk * itemsize * 2        # A tile, double-buffered
                   + tm * f_out_p * 4 * 2        # f32 output block
                   + f_out_p * 4 * 2)            # bias
    xw_resident = fixed_bytes + 2 * n_k * f_out_p * itemsize <= budget

    # Zero-pad operands (zero rows/cols contribute exactly nothing).
    A_p = jnp.zeros((n_m, n_k), cdt).at[:N, :N].set(A.astype(cdt))
    x_p = jnp.zeros((n_k, F_in), cdt).at[:N, :].set(x.astype(cdt))
    W_p = jnp.zeros((F_in, f_out_p), cdt).at[:, :F_out].set(W.astype(cdt))
    b_p = jnp.zeros((1, f_out_p), jnp.float32)
    if b is not None:
        b_p = b_p.at[0, :F_out].set(b.astype(jnp.float32))

    # ---- Stage 1: XW = x @ W (staged once) ----
    xw = pl.pallas_call(
        _xw_kernel,
        out_shape=jax.ShapeDtypeStruct((n_k, f_out_p), cdt),
        grid_spec=pltpu.PrefetchScalarGridSpec(
            num_scalar_prefetch=0,
            grid=(n_k // tk,),
            in_specs=[
                pl.BlockSpec((tk, F_in), lambda r: (r, 0)),
                pl.BlockSpec((F_in, f_out_p), lambda r: (0, 0)),
            ],
            out_specs=pl.BlockSpec((tk, f_out_p), lambda r: (r, 0)),
        ),
        compiler_params=pltpu.CompilerParams(
            dimension_semantics=("parallel",),
            vmem_limit_bytes=vmem_limit,
        ),
        cost_estimate=pl.CostEstimate(
            flops=2 * n_k * F_in * f_out_p,
            transcendentals=0,
            bytes_accessed=(n_k * F_in + F_in * f_out_p + n_k * f_out_p)
            * itemsize,
        ),
    )(x_p, W_p)
    # TODO(synk): when XW is resident, stage 1 could be fused into stage 2
    # (compute the k-th XW slice under @pl.when on the first visit); skipped
    # here because a plain @pl.when(i == 0) guard breaks under megacore
    # sharding of the "parallel" row axis on v7x.

    # ---- Stage 2: Z = A @ XW + b ----
    if xw_resident:
        kernel = functools.partial(_a_xw_resident_kernel, tk=tk)
        xw_spec = pl.BlockSpec((n_k, f_out_p), lambda i, k: (0, 0))  # resident
        xw_reads = 1
    else:
        kernel = _a_xw_tiled_kernel
        xw_spec = pl.BlockSpec((tk, f_out_p), lambda i, k: (k, 0))   # streamed
        xw_reads = n_m // tm  # XW re-fetched once per row tile

    # TODO(synk): sweep pipeline_mode=pl.Buffered(3) on the A BlockSpec (helps
    # hide DMA jitter by a few %) when the extra tm*tk buffer fits the budget.
    z_p = pl.pallas_call(
        kernel,
        out_shape=jax.ShapeDtypeStruct((n_m, f_out_p), jnp.float32),
        grid_spec=pltpu.PrefetchScalarGridSpec(
            num_scalar_prefetch=0,
            grid=(n_m // tm, n_k // tk),
            in_specs=[
                pl.BlockSpec((tm, tk), lambda i, k: (i, k)),
                xw_spec,
                pl.BlockSpec((1, f_out_p), lambda i, k: (0, 0)),
            ],
            out_specs=pl.BlockSpec((tm, f_out_p), lambda i, k: (i, 0)),
        ),
        compiler_params=pltpu.CompilerParams(
            dimension_semantics=("parallel", "arbitrary"),
            vmem_limit_bytes=vmem_limit,
        ),
        cost_estimate=pl.CostEstimate(
            flops=2 * n_m * n_k * f_out_p,
            transcendentals=0,
            bytes_accessed=n_m * n_k * itemsize
            + xw_reads * n_k * f_out_p * itemsize
            + f_out_p * 4
            + n_m * f_out_p * 4,
        ),
    )(A_p, xw, b_p)

    # Slice away the padding.
    return z_p[:N, :F_out]


def init_params(key, in_features, out_features, bias=True):
    # Xavier normal init for W (matches nn.init.xavier_normal_), zeros for b.
    std = (2.0 / (in_features + out_features)) ** 0.5
    W = std * jax.random.normal(key, (in_features, out_features), dtype=jnp.float32)
    b = jnp.zeros((out_features,), dtype=jnp.float32) if bias else None
    return W, b


# TODO(synk): for genuinely sparse adjacencies, a block-sparse variant driven
# by PrefetchScalarGridSpec nonzero-block lists could skip empty (i, k) tiles.
# TODO(synk): accuracy-gated int8 (v5e/v6e) / fp8 (v7x) quantization of A with
# per-row scales would halve the dominant HBM stream in this mem-bound kernel.

if __name__ == "__main__":
    N = 16          # number of graph nodes
    F_IN = 8        # in_features
    F_OUT = 32      # out_features

    key = jax.random.PRNGKey(0)
    k_a, k_x, k_w = jax.random.split(key, 3)

    # Symmetric, self-looped, row-normalized adjacency (typical GCN input).
    A_raw = (jax.random.uniform(k_a, (N, N)) > 0.7).astype(jnp.float32)
    A_raw = jnp.maximum(A_raw, A_raw.T) + jnp.eye(N, dtype=jnp.float32)
    A = A_raw / jnp.sum(A_raw, axis=1, keepdims=True)

    x = jax.random.normal(k_x, (N, F_IN), dtype=jnp.float32)
    W, b = init_params(k_w, F_IN, F_OUT, bias=True)

    z = spectral_graph_conv(A, x, W, b)                              # bf16 MXU path
    z_f32 = spectral_graph_conv(A, x, W, b, compute_dtype=jnp.float32)
    jax.block_until_ready((z, z_f32))

    # Reference check in plain JAX.
    z_ref = A @ (x @ W) + b
    assert z.shape == (N, F_OUT)
    assert jnp.allclose(z_f32, z_ref, atol=1e-5, rtol=1e-5)          # exact-path check
    assert jnp.allclose(z, z_ref, atol=5e-2, rtol=5e-2)              # bf16-path check

    print("KERNEL_OK")
</pallas_src>

<mosaic_0001>
module attributes {stable_mosaic.version = 11 : i64} {
  func.func @_xw_kernel(%arg0: i32, %arg1: memref<128x8xbf16, #tpu.memory_space<vmem>>, %arg2: memref<8x128xbf16, #tpu.memory_space<vmem>>, %arg3: memref<128x128xbf16, #tpu.memory_space<vmem>>) attributes {dimension_semantics = [#tpu.dimension_semantics<parallel>], iteration_bounds = array<i64: 1>, scalar_prefetch = 0 : i64, scratch_operands = 0 : i64, tpu.core_type = #tpu.core_type<tc>, window_params = [{transform_indices = @transform_0, window_bounds = array<i64: 128, 8>}, {pipeline_mode = #tpu.pipeline_mode<synchronous>, transform_indices = @transform_1, window_bounds = array<i64: 8, 128>}, {transform_indices = @transform_2, window_bounds = array<i64: 128, 128>}]} {
    %c0 = arith.constant 0 : index
    %c0_0 = arith.constant 0 : index
    %0 = vector.load %arg1[%c0, %c0_0] : memref<128x8xbf16, #tpu.memory_space<vmem>>, vector<128x8xbf16>
    %c0_1 = arith.constant 0 : index
    %c0_2 = arith.constant 0 : index
    %1 = vector.load %arg2[%c0_1, %c0_2] : memref<8x128xbf16, #tpu.memory_space<vmem>>, vector<8x128xbf16>
    %cst = arith.constant dense<0.000000e+00> : vector<128x128xf32>
    %2 = tpu.matmul %0, %1, %cst {dimension_numbers = #tpu.dot_dimension_numbers<[1], [0], [0], [1], [0, 0, 1, 1], [], []>} : vector<128x8xbf16>, vector<8x128xbf16>, vector<128x128xf32> -> vector<128x128xf32>
    %3 = arith.truncf %2 : vector<128x128xf32> to vector<128x128xbf16>
    %c0_3 = arith.constant 0 : index
    %c0_4 = arith.constant 0 : index
    %4 = vector.load %arg3[%c0_3, %c0_4] : memref<128x128xbf16, #tpu.memory_space<vmem>>, vector<128x128xbf16>
    tpu.vector_store %arg3[%c0_3, %c0_4], %3 {strides = array<i32>} : memref<128x128xbf16, #tpu.memory_space<vmem>>, vector<128x128xbf16>,
    return
  }
  func.func @transform_0(%arg0: i32) -> (i32, i32) {
    %c0_i32 = arith.constant 0 : i32
    %c0_i32_0 = arith.constant 0 : i32
    return %arg0, %c0_i32 : i32, i32
  }
  func.func @transform_1(%arg0: i32) -> (i32, i32) {
    %c0_i32 = arith.constant 0 : i32
    %c0_i32_0 = arith.constant 0 : i32
    %c0_i32_1 = arith.constant 0 : i32
    return %c0_i32, %c0_i32_0 : i32, i32
  }
  func.func @transform_2(%arg0: i32) -> (i32, i32) {
    %c0_i32 = arith.constant 0 : i32
    %c0_i32_0 = arith.constant 0 : i32
    return %arg0, %c0_i32 : i32, i32
  }
}

</mosaic_0001>

<llo_original>
// kernel: tpu_custom_call.1
$region0: #{tpu_custom_call.1}
  #allocation0 [shape = 'u32[]', space=smem, size = 0x4, offset = 0x4, fixed_abs, tag = 'smem constant byte address 0x4 - core index']
  #allocation1 [shape = 'u32[72,128]{1,0:T(1,128)}', space=vmem, size = 0x9000, scoped, tag = 'internal scratch']
  %s0 = inlined_call_operand.vmem [shape: bf16[128,8], index: 0, kind: input, shape index: {}]
  %s1 = inlined_call_operand.vmem [shape: bf16[8,128], index: 1, kind: input, shape index: {}]
  %s2 = inlined_call_operand.hbm [shape: bf16[128,128], index: 2, kind: output, shape index: {}]
  %s3 = sld [smem:[#allocation0]]
  $region18: #{tpu_custom_call.1} parent=0
    _
  %s5 = ssub.s32 1, %s3
  %s6 = scalar_select 0, %s5, %s3
  $region1: #{tpu_custom_call.1} parent=0
    #allocation2 [shape = 'u8[32768]{0}', space=vmem, size = 0x8000, scoped, tag = 'output window, operand 0, single buffered']
    #allocation3 [shape = 's32[1]{0}', space=sflag, size = 0x4, scoped, tag = 'scoped memory for tpu_custom_call.1']
    %7 = vsyncpa [#allocation3], 0
    // Predicated region
    $region2: #{tpu_custom_call.1} parent=1 // pred_check
      _
    $region3: #{tpu_custom_call.1} parent=1 // pred_check_branch
      %9 = sbr.rel (0) target = $region5
    $region4: #{tpu_custom_call.1} parent=1 // pred_region
      _
    $region5: #{tpu_custom_call.1} parent=1 // pred_fallthru
      _
    // Predicated region
    $region6: #{tpu_custom_call.1} parent=1 // pred_check
      _
    $region7: #{tpu_custom_call.1} parent=1 // pred_check_branch
      %11 = sbr.rel (0) target = $region9
    $region8: #{tpu_custom_call.1} parent=1 // pred_region
      _
    $region9: #{tpu_custom_call.1} parent=1 // pred_fallthru
      _
    %v13 = vld [vmem:[%s0] sm:$0xf]
    %v14 = vld [vmem:[%s0 + $0x4] sm:$0xf]
    %v15 = vld [vmem:[%s0 + $0x8] sm:$0xf]
    %v16 = vld [vmem:[%s0 + $0xc] sm:$0xf]
    %v17 = vld [vmem:[%s0 + $0x10] sm:$0xf]
    %v18 = vld [vmem:[%s0 + $0x14] sm:$0xf]
    %v19 = vld [vmem:[%s0 + $0x18] sm:$0xf]
    %v20 = vld [vmem:[%s0 + $0x1c] sm:$0xf]
    %v21 = vld [vmem:[%s0 + $0x20] sm:$0xf]
    %v22 = vld [vmem:[%s0 + $0x24] sm:$0xf]
    %v23 = vld [vmem:[%s0 + $0x28] sm:$0xf]
    %v24 = vld [vmem:[%s0 + $0x2c] sm:$0xf]
    %v25 = vld [vmem:[%s0 + $0x30] sm:$0xf]
    %v26 = vld [vmem:[%s0 + $0x34] sm:$0xf]
    %v27 = vld [vmem:[%s0 + $0x38] sm:$0xf]
    %v28 = vld [vmem:[%s0 + $0x3c] sm:$0xf]
    %v29 = vld [vmem:[%s1] sm:$0xf]
    %v46 = vunpack.c.l.b16 %v13
    %v47 = vunpack.c.l.b16 %v14
    %v48 = vunpack.c.l.b16 %v15
    %v49 = vunpack.c.l.b16 %v16
    %v50 = vunpack.c.l.b16 %v17
    %v51 = vunpack.c.l.b16 %v18
    %v52 = vunpack.c.l.b16 %v19
    %v53 = vunpack.c.l.b16 %v20
    %v54 = vunpack.c.l.b16 %v21
    %v55 = vunpack.c.l.b16 %v22
    %v56 = vunpack.c.l.b16 %v23
    %v57 = vunpack.c.l.b16 %v24
    %v58 = vunpack.c.l.b16 %v25
    %v59 = vunpack.c.l.b16 %v26
    %v60 = vunpack.c.l.b16 %v27
    %v61 = vunpack.c.l.b16 %v28
    %v62 = vpack.c.b16 %v47, %v46
    %v63 = vpack.c.b16 %v49, %v48
    %v64 = vpack.c.b16 %v51, %v50
    %v65 = vpack.c.b16 %v53, %v52
    %v66 = vpack.c.b16 %v55, %v54
    %v67 = vpack.c.b16 %v57, %v56
    %v68 = vpack.c.b16 %v59, %v58
    %v69 = vpack.c.b16 %v61, %v60
    %vm70 = vcmask 64512
    %v72 = vsel %vm70, %v62, 0
    %v75 = vsel %vm70, %v63, 0
    %v78 = vsel %vm70, %v64, 0
    %v81 = vsel %vm70, %v65, 0
    %v84 = vsel %vm70, %v66, 0
    %v87 = vsel %vm70, %v67, 0
    %v90 = vsel %vm70, %v68, 0
    %v93 = vsel %vm70, %v69, 0
    %vm95 = vcmask 1043456
    %v97 = vsel %vm95, %v29, 0
    %99 = vmatpush.bf16.msra.mxu0 0
    %100 = vmatpush.bf16.msra.mxu0 0
    %101 = vmatpush.bf16.msra.mxu0 0
    %102 = vmatpush.bf16.msra.mxu0 0
    %103 = vmatpush.bf16.msra.mxu0 0
    %104 = vmatpush.bf16.msra.mxu0 0
    %105 = vmatpush.bf16.msra.mxu0 0
    %106 = vmatpush.bf16.msra.mxu0 %v97
    %107 = vmatmul.bf16.gmra.mxu0 %v72
    %v108 = vpop.f32.mrf.mxu0
    %v109 = vadd.f32 0.0, %v108
    %v110 = vpop.f32.mrf.mxu0
    %v111 = vadd.f32 0.0, %v110
    %112 = vmatmul.bf16.gmra.mxu0 %v75
    %v113 = vpop.f32.mrf.mxu0
    %v114 = vadd.f32 0.0, %v113
    %v115 = vpop.f32.mrf.mxu0
    %v116 = vadd.f32 0.0, %v115
    %117 = vmatmul.bf16.gmra.mxu0 %v78
    %v118 = vpop.f32.mrf.mxu0
    %v119 = vadd.f32 0.0, %v118
    %v120 = vpop.f32.mrf.mxu0
    %v121 = vadd.f32 0.0, %v120
    %122 = vmatmul.bf16.gmra.mxu0 %v81
    %v123 = vpop.f32.mrf.mxu0
    %v124 = vadd.f32 0.0, %v123
    %v125 = vpop.f32.mrf.mxu0
    %v126 = vadd.f32 0.0, %v125
    %127 = vmatmul.bf16.gmra.mxu0 %v84
    %v128 = vpop.f32.mrf.mxu0
    %v129 = vadd.f32 0.0, %v128
    %v130 = vpop.f32.mrf.mxu0
    %v131 = vadd.f32 0.0, %v130
    %132 = vmatmul.bf16.gmra.mxu0 %v87
    %v133 = vpop.f32.mrf.mxu0
    %v134 = vadd.f32 0.0, %v133
    %v135 = vpop.f32.mrf.mxu0
    %v136 = vadd.f32 0.0, %v135
    %137 = vmatmul.bf16.gmra.mxu0 %v90
    %v138 = vpop.f32.mrf.mxu0
    %v139 = vadd.f32 0.0, %v138
    %v140 = vpop.f32.mrf.mxu0
    %v141 = vadd.f32 0.0, %v140
    %142 = vmatmul.bf16.gmra.mxu0 %v93
    %v143 = vpop.f32.mrf.mxu0
    %v144 = vadd.f32 0.0, %v143
    %v145 = vpop.f32.mrf.mxu0
    %v146 = vadd.f32 0.0, %v145
    %147 = vdwg.mxu0
    %v148 = vpack.c.bf16 %v109, %v109
    %v149 = vpack.c.bf16 %v111, %v111
    %v150 = vpack.c.bf16 %v114, %v114
    %v151 = vpack.c.bf16 %v116, %v116
    %v152 = vpack.c.bf16 %v119, %v119
    %v153 = vpack.c.bf16 %v121, %v121
    %v154 = vpack.c.bf16 %v124, %v124
    %v155 = vpack.c.bf16 %v126, %v126
    %v156 = vpack.c.bf16 %v129, %v129
    %v157 = vpack.c.bf16 %v131, %v131
    %v158 = vpack.c.bf16 %v134, %v134
    %v159 = vpack.c.bf16 %v136, %v136
    %v160 = vpack.c.bf16 %v139, %v139
    %v161 = vpack.c.bf16 %v141, %v141
    %v162 = vpack.c.bf16 %v144, %v144
    %v163 = vpack.c.bf16 %v146, %v146
    %164 = vst [vmem:[#allocation2] sm:$0xf] %v148
    %165 = vst [vmem:[#allocation2 + $0x4] sm:$0xf] %v149
    %166 = vst [vmem:[#allocation2 + $0x8] sm:$0xf] %v150
    %167 = vst [vmem:[#allocation2 + $0xc] sm:$0xf] %v151
    %168 = vst [vmem:[#allocation2 + $0x10] sm:$0xf] %v152
    %169 = vst [vmem:[#allocation2 + $0x14] sm:$0xf] %v153
    %170 = vst [vmem:[#allocation2 + $0x18] sm:$0xf] %v154
    %171 = vst [vmem:[#allocation2 + $0x1c] sm:$0xf] %v155
    %172 = vst [vmem:[#allocation2 + $0x20] sm:$0xf] %v156
    %173 = vst [vmem:[#allocation2 + $0x24] sm:$0xf] %v157
    %174 = vst [vmem:[#allocation2 + $0x28] sm:$0xf] %v158
    %175 = vst [vmem:[#allocation2 + $0x2c] sm:$0xf] %v159
    %176 = vst [vmem:[#allocation2 + $0x30] sm:$0xf] %v160
    %177 = vst [vmem:[#allocation2 + $0x34] sm:$0xf] %v161
    %178 = vst [vmem:[#allocation2 + $0x38] sm:$0xf] %v162
    %179 = vst [vmem:[#allocation2 + $0x3c] sm:$0xf] %v163
    // Predicated region
    $region10: #{tpu_custom_call.1} parent=1 // pred_check
      _
    $region11: #{tpu_custom_call.1} parent=1 // pred_check_branch
      %181 = sbr.rel (0) target = $region13
    $region12: #{tpu_custom_call.1} parent=1 // pred_region
      %183 = vsyncadd [#allocation3], 0
      %s184 = sshll.u32 [#allocation2], 4
      %s185 = int_to_ptr.vmem [resolvable:$true] %s184
      %s186 = sshll.u32 %s2, 4
      %s187 = int_to_ptr.hbm [resolvable:$true] %s186
      %192 = dma.vmem_to_hbm [thread:$0]  %s185, 1024, %s187, [#allocation3], 64, 64, 4
    $region13: #{tpu_custom_call.1} parent=1 // pred_fallthru
      _
    // Predicated region
    $region14: #{tpu_custom_call.1} parent=1 // pred_check
      _
    $region15: #{tpu_custom_call.1} parent=1 // pred_check_branch
      %194 = sbr.rel (0) target = $region17
    $region16: #{tpu_custom_call.1} parent=1 // pred_region
      %196 = dma.done [#allocation3], 1024
    $region17: #{tpu_custom_call.1} parent=1 // pred_fallthru
      _
    %197 = vsyncpa [#allocation3], 1

</llo_original>
